<compile_context>
chip_gen: v7x
topology: tpu7x:2x2x1
jax: 0.10.0
libtpu: 0.0.40
codegen_flags: <defaults>
</compile_context>

<pallas_src>
import jax
import jax.numpy as jnp
from jax import lax
from jax.experimental import pallas as pl
from jax.experimental.pallas import tpu as pltpu


def _round_up(x, m):
    return ((x + m - 1) // m) * m


def _mlp_proj_kernel(x_ref, w_ref, b_ref, o_ref):
    # x_ref: (1, C, tm)  native NC(HW) slab (channels on sublanes, tokens on lanes)
    # w_ref: (C, E)      VMEM-resident weight (constant block index)
    # b_ref: (1, E)      VMEM-resident f32 bias
    # o_ref: (1, tm, E)  output tile, lane-dense in E
    x = x_ref[0]                                   # (C, tm)
    # Contract the channel axis of both operands: (C, tm) x (C, E) -> (tm, E).
    # This performs the tokens-last transpose on-chip (XLU/MXU) instead of in HBM.
    acc = lax.dot_general(
        x, w_ref[...],
        dimension_numbers=(((0,), (0,)), ((), ())),
        preferred_element_type=jnp.float32,
    )
    o_ref[0] = (acc + b_ref[...]).astype(o_ref.dtype)


def mlp_forward(x_nchw, weight, bias, *, tm=512,
                compute_dtype=jnp.bfloat16, out_dtype=None):
    """Reproduces MLP.forward: (B, C, H, W) -> (B, H*W, E)."""
    B, C, H, W = x_nchw.shape
    Cw, E = weight.shape
    assert C == Cw, "weight must be (C, E)"
    HW = H * W
    if out_dtype is None:
        out_dtype = x_nchw.dtype

    # flatten(2) is a free, contiguous reshape -- no transpose / extra HBM pass.
    x_flat = x_nchw.reshape(B, C, HW)
    if compute_dtype is not None:
        x_flat = x_flat.astype(compute_dtype)
        weight = weight.astype(compute_dtype)
    bias2d = bias.reshape(1, E).astype(jnp.float32)   # bias add on f32 accumulator

    # Token tile: as large as sensible; full HW if it already fits one tile.
    if HW <= tm:
        tm = HW                        # full-dim block is always a legal shape
    else:
        tm = _round_up(tm, 128)        # lane-aligned; edge tile handled by cdiv+mask

    grid = (B, pl.cdiv(HW, tm))

    return pl.pallas_call(
        _mlp_proj_kernel,
        out_shape=jax.ShapeDtypeStruct((B, HW, E), out_dtype),
        grid_spec=pltpu.PrefetchScalarGridSpec(
            num_scalar_prefetch=0,
            grid=grid,
            in_specs=[
                pl.BlockSpec((1, C, tm), lambda b, i: (b, 0, i)),  # X slab
                pl.BlockSpec((C, E), lambda b, i: (0, 0)),         # W (resident)
                pl.BlockSpec((1, E), lambda b, i: (0, 0)),         # bias (resident)
            ],
            out_specs=pl.BlockSpec((1, tm, E), lambda b, i: (b, i, 0)),
        ),
        compiler_params=pltpu.CompilerParams(
            dimension_semantics=("parallel", "parallel"),
        ),
    )(x_flat, weight, bias2d)


if __name__ == "__main__":
    # Small shapes consistent with the module (input_dim=C, embed_dim=E).
    B, C, H, W = 2, 128, 8, 8          # HW = 64 tokens per image
    E = 256

    key = jax.random.PRNGKey(0)
    kx, kw, kb = jax.random.split(key, 3)

    x = jax.random.normal(kx, (B, C, H, W), dtype=jnp.float32)

    # Deterministic nn.Linear-style init: U(-1/sqrt(C), 1/sqrt(C))
    bound = 1.0 / (C ** 0.5)
    weight = jax.random.uniform(kw, (C, E), minval=-bound, maxval=bound,
                                dtype=jnp.float32)
    bias = jax.random.uniform(kb, (E,), minval=-bound, maxval=bound,
                              dtype=jnp.float32)

    out = mlp_forward(x, weight, bias)
    out = jax.block_until_ready(out)
    assert out.shape == (B, H * W, E)

    # Reference with the same bf16 rounding of X/W and f32 accumulation.
    xb = x.astype(jnp.bfloat16).astype(jnp.float32).reshape(B, C, H * W)
    wb = weight.astype(jnp.bfloat16).astype(jnp.float32)
    ref = jnp.einsum("bct,ce->bte", xb, wb) + bias
    assert jnp.allclose(out, ref, atol=1e-3, rtol=1e-3), \
        float(jnp.max(jnp.abs(out - ref)))

    # Looser sanity check against the pure-f32 math of the PyTorch module.
    ref_f32 = jnp.einsum("bct,ce->bte", x.reshape(B, C, H * W), weight) + bias
    assert jnp.allclose(out, ref_f32, atol=5e-2, rtol=5e-2)

    print("KERNEL_OK")
</pallas_src>

<mosaic_0001>
module attributes {stable_mosaic.version = 11 : i64} {
  func.func @_mlp_proj_kernel(%arg0: i32, %arg1: i32, %arg2: memref<1x128x64xbf16, #tpu.memory_space<vmem>>, %arg3: memref<128x256xbf16, #tpu.memory_space<vmem>>, %arg4: memref<1x256xf32, #tpu.memory_space<vmem>>, %arg5: memref<1x64x256xf32, #tpu.memory_space<vmem>>) attributes {dimension_semantics = [#tpu.dimension_semantics<parallel>, #tpu.dimension_semantics<parallel>], iteration_bounds = array<i64: 2, 1>, scalar_prefetch = 0 : i64, scratch_operands = 0 : i64, tpu.core_type = #tpu.core_type<tc>, window_params = [{transform_indices = @transform_0, window_bounds = array<i64: 1, 128, 64>}, {pipeline_mode = #tpu.pipeline_mode<synchronous>, transform_indices = @transform_1, window_bounds = array<i64: 128, 256>}, {pipeline_mode = #tpu.pipeline_mode<synchronous>, transform_indices = @transform_2, window_bounds = array<i64: 1, 256>}, {transform_indices = @transform_3, window_bounds = array<i64: 1, 64, 256>}]} {
    %c0 = arith.constant 0 : index
    %c0_0 = arith.constant 0 : index
    %c0_1 = arith.constant 0 : index
    %0 = vector.load %arg2[%c0, %c0_0, %c0_1] : memref<1x128x64xbf16, #tpu.memory_space<vmem>>, vector<1x128x64xbf16>
    %1 = vector.shape_cast %0 : vector<1x128x64xbf16> to vector<128x64xbf16>
    %c0_2 = arith.constant 0 : index
    %c0_3 = arith.constant 0 : index
    %2 = vector.load %arg3[%c0_2, %c0_3] : memref<128x256xbf16, #tpu.memory_space<vmem>>, vector<128x256xbf16>
    %cst = arith.constant dense<0.000000e+00> : vector<64x256xf32>
    %3 = tpu.matmul %1, %2, %cst {dimension_numbers = #tpu.dot_dimension_numbers<[0], [0], [1], [1], [0, 1, 1, 1], [], []>} : vector<128x64xbf16>, vector<128x256xbf16>, vector<64x256xf32> -> vector<64x256xf32>
    %c0_4 = arith.constant 0 : index
    %c0_5 = arith.constant 0 : index
    %4 = vector.load %arg4[%c0_4, %c0_5] : memref<1x256xf32, #tpu.memory_space<vmem>>, vector<1x256xf32>
    %5 = vector.broadcast %4 : vector<1x256xf32> to vector<64x256xf32>
    %6 = arith.addf %3, %5 : vector<64x256xf32>
    %c0_6 = arith.constant 0 : index
    %c0_7 = arith.constant 0 : index
    %c0_8 = arith.constant 0 : index
    %7 = vector.load %arg5[%c0_6, %c0_7, %c0_8] : memref<1x64x256xf32, #tpu.memory_space<vmem>>, vector<1x64x256xf32>
    %8 = vector.shape_cast %7 : vector<1x64x256xf32> to vector<64x256xf32>
    %9 = vector.shape_cast %6 : vector<64x256xf32> to vector<1x64x256xf32>
    tpu.vector_store %arg5[%c0_6, %c0_7, %c0_8], %9 {strides = array<i32>} : memref<1x64x256xf32, #tpu.memory_space<vmem>>, vector<1x64x256xf32>,
    return
  }
  func.func @transform_0(%arg0: i32, %arg1: i32) -> (i32, i32, i32) {
    %c0_i32 = arith.constant 0 : i32
    %c0_i32_0 = arith.constant 0 : i32
    return %arg0, %c0_i32, %arg1 : i32, i32, i32
  }
  func.func @transform_1(%arg0: i32, %arg1: i32) -> (i32, i32) {
    %c0_i32 = arith.constant 0 : i32
    %c0_i32_0 = arith.constant 0 : i32
    %c0_i32_1 = arith.constant 0 : i32
    return %c0_i32, %c0_i32_0 : i32, i32
  }
  func.func @transform_2(%arg0: i32, %arg1: i32) -> (i32, i32) {
    %c0_i32 = arith.constant 0 : i32
    %c0_i32_0 = arith.constant 0 : i32
    %c0_i32_1 = arith.constant 0 : i32
    return %c0_i32, %c0_i32_0 : i32, i32
  }
  func.func @transform_3(%arg0: i32, %arg1: i32) -> (i32, i32, i32) {
    %c0_i32 = arith.constant 0 : i32
    %c0_i32_0 = arith.constant 0 : i32
    return %arg0, %arg1, %c0_i32 : i32, i32, i32
  }
}

</mosaic_0001>

<llo_original>
// kernel: tpu_custom_call.1
$region0: #{tpu_custom_call.1}
  #allocation0 [shape = 'u32[]', space=smem, size = 0x4, offset = 0x4, fixed_abs, tag = 'smem constant byte address 0x4 - core index']
  #allocation1 [shape = 'u32[144,128]{1,0:T(1,128)}', space=vmem, size = 0x12000, scoped, tag = 'internal scratch']
  %s0 = inlined_call_operand.vmem [shape: bf16[2,128,64], index: 0, kind: input, shape index: {}]
  %s1 = inlined_call_operand.vmem [shape: bf16[128,256], index: 1, kind: input, shape index: {}]
  %s2 = inlined_call_operand.vmem [shape: f32[1,256], index: 2, kind: input, shape index: {}]
  %s3 = inlined_call_operand.hbm [shape: f32[2,64,256], index: 3, kind: output, shape index: {}]
  %s4 = sld [smem:[#allocation0]]
  $region45: #{tpu_custom_call.1} parent=0
    _
  %s6 = ssub.s32 1, %s4
  %s7 = scalar_select 0, %s6, %s4
  $region1: #{tpu_custom_call.1} parent=0
    #allocation2 [shape = 'u8[131072]{0}', space=vmem, size = 0x20000, scoped, tag = 'output window, operand 0']
    #allocation3 [shape = 's32[2]{0}', space=sflag, size = 0x8, scoped, tag = 'scoped memory for tpu_custom_call.1']
    %8 = vsyncpa [#allocation3], 0
    %s9 = scalar_lea.sflag [#allocation3], 1
    %10 = vsyncpa %s9, 0
    loop: start=0, step=1, limit=4
    $region2: #{tpu_custom_call.1} parent=1 // loop_pre_header
      _
    $region3: #{tpu_custom_call.1} parent=1 // loop_header
      %s12 = sphi 0, %s16
      %p13 = scmp.ge.s32.totalorder %s12, 4
      %s19 = sphi 0, %s31
      %s20 = sphi 0, %s27
      %s21 = sphi 0, %s19
      %s22 = sphi 0, %s20
      %s23 = sphi 0, %s21
      %s24 = sphi 0, %s22
      %s36 = sphi 0, %s38
      %s39 = sphi 0, %s36
      %s40 = sphi 0, %s39
      %s56 = sphi 0, %s40
      %s60 = sphi 0, %s60
      %s62 = sphi 0, %s60
      %s63 = sphi 0, %s62
      %s77 = sphi 0, %s63
      %s81 = sphi 0, %s81
      %s83 = sphi 0, %s81
      %s84 = sphi 0, %s83
      %s98 = sphi 0, %s84
      %s106 = sphi 0, %s108
      %s109 = sphi 0, %s106
      %s110 = sphi 0, %s109
      %s126 = sphi 0, %s110
    $region4: #{tpu_custom_call.1} parent=1 // loop_header_branch
      %15 = sbr.rel (%p13) target = $region8
    $region5: #{tpu_custom_call.1} parent=1 // loop_body
      %s17 = ssub.s32 %s12, 1
      %s18 = ssub.s32 %s12, 2
      %s25 = sadd.s32 1, %s20
      %p26 = scmp.ge.s32.totalorder %s25, 1
      %s27 = scalar_select %p26, 0, %s25
      %s28 = sadd.s32 1, %s19
      %s29 = scalar_select %p26, %s28, %s19
      %p30 = scmp.ge.s32.totalorder %s29, 2
      %s31 = scalar_select %p30, 0, %s29
      %s32 = ssub.s32 %s19, %s31
      %s33 = ssub.s32 %s20, %s27
      %s34 = sor.u32 %s32, %s33
      %p35 = scmp.eq.s32.totalorder %s34, 0
      %s37 = sadd.s32 %s36, 1
      %s38 = scalar_select %p35, %s36, %s37
      %p41 = pneg %p35
      %p42 = scmp.eq.s32.totalorder %s12, 1
      %p43 = por %p41, %p42
      %p44 = scmp.ne.s32.totalorder %s36, %s39
      %p45 = scmp.eq.s32.totalorder %s12, 0
      %p46 = por %p44, %p45
      %p47 = scmp.ne.s32.totalorder %s36, %s39
      %p48 = scmp.eq.s32.totalorder %s17, 1
      %p49 = por %p47, %p48
      %p50 = scmp.ne.s32.totalorder %s39, %s40
      %p51 = scmp.eq.s32.totalorder %s17, 0
      %p52 = por %p50, %p51
      %p53 = scmp.ne.s32.totalorder %s39, %s40
      %p54 = scmp.eq.s32.totalorder %s18, 1
      %p55 = por %p53, %p54
      %p57 = scmp.ne.s32.totalorder %s40, %s56
      %p58 = scmp.eq.s32.totalorder %s18, 0
      %p59 = por %p57, %p58
      %s61 = sadd.s32 %s60, 1
      %p64 = scmp.eq.s32.totalorder %s12, 1
      %p65 = scmp.ne.s32.totalorder %s60, %s62
      %p66 = scmp.eq.s32.totalorder %s12, 0
      %p67 = por %p65, %p66
      %p68 = scmp.ne.s32.totalorder %s60, %s62
      %p69 = scmp.eq.s32.totalorder %s17, 1
      %p70 = por %p68, %p69
      %p71 = scmp.ne.s32.totalorder %s62, %s63
      %p72 = scmp.eq.s32.totalorder %s17, 0
      %p73 = por %p71, %p72
      %p74 = scmp.ne.s32.totalorder %s62, %s63
      %p75 = scmp.eq.s32.totalorder %s18, 1
      %p76 = por %p74, %p75
      %p78 = scmp.ne.s32.totalorder %s63, %s77
      %p79 = scmp.eq.s32.totalorder %s18, 0
      %p80 = por %p78, %p79
      %s82 = sadd.s32 %s81, 1
      %p85 = scmp.eq.s32.totalorder %s12, 1
      %p86 = scmp.ne.s32.totalorder %s81, %s83
      %p87 = scmp.eq.s32.totalorder %s12, 0
      %p88 = por %p86, %p87
      %p89 = scmp.ne.s32.totalorder %s81, %s83
      %p90 = scmp.eq.s32.totalorder %s17, 1
      %p91 = por %p89, %p90
      %p92 = scmp.ne.s32.totalorder %s83, %s84
      %p93 = scmp.eq.s32.totalorder %s17, 0
      %p94 = por %p92, %p93
      %p95 = scmp.ne.s32.totalorder %s83, %s84
      %p96 = scmp.eq.s32.totalorder %s18, 1
      %p97 = por %p95, %p96
      %p99 = scmp.ne.s32.totalorder %s84, %s98
      %p100 = scmp.eq.s32.totalorder %s18, 0
      %p101 = por %p99, %p100
      %s102 = ssub.s32 %s19, %s31
      %s103 = ssub.s32 %s20, %s27
      %s104 = sor.u32 %s102, %s103
      %p105 = scmp.eq.s32.totalorder %s104, 0
      %s107 = sadd.s32 %s106, 1
      %s108 = scalar_select %p105, %s106, %s107
      %p111 = pneg %p105
      %p112 = scmp.eq.s32.totalorder %s12, 1
      %p113 = por %p111, %p112
      %p114 = scmp.ne.s32.totalorder %s106, %s109
      %p115 = scmp.eq.s32.totalorder %s12, 0
      %p116 = por %p114, %p115
      %p117 = scmp.ne.s32.totalorder %s106, %s109
      %p118 = scmp.eq.s32.totalorder %s17, 1
      %p119 = por %p117, %p118
      %p120 = scmp.ne.s32.totalorder %s109, %s110
      %p121 = scmp.eq.s32.totalorder %s17, 0
      %p122 = por %p120, %p121
      %p123 = scmp.ne.s32.totalorder %s109, %s110
      %p124 = scmp.eq.s32.totalorder %s18, 1
      %p125 = por %p123, %p124
      %p127 = scmp.ne.s32.totalorder %s110, %s126
      %p128 = scmp.eq.s32.totalorder %s18, 0
      %p129 = por %p127, %p128
      %p130 = scmp.le.s32.totalorder 1, %s12
      %p131 = scmp.lt.s32.totalorder %s12, 3
      %p132 = pnand %p130, %p131
      %p133 = pneg %p132
      // Predicated region
      $region9: #{tpu_custom_call.1} parent=5 // pred_check
        _
      $region10: #{tpu_custom_call.1} parent=5 // pred_check_branch
        %135 = sbr.rel (%p132) target = $region12
      $region11: #{tpu_custom_call.1} parent=5 // pred_region
        %s136 = ssub.s32 %s12, 1
        // Predicated region
        $region13: #{tpu_custom_call.1} parent=11 // pred_check
          %p137 = pneg %p73
        $region14: #{tpu_custom_call.1} parent=11 // pred_check_branch
          %139 = sbr.rel (%p137) target = $region16
        $region15: #{tpu_custom_call.1} parent=11 // pred_region
          _
        $region16: #{tpu_custom_call.1} parent=11 // pred_fallthru
          _
        // Predicated region
        $region17: #{tpu_custom_call.1} parent=11 // pred_check
          %p140 = pneg %p94
        $region18: #{tpu_custom_call.1} parent=11 // pred_check_branch
          %142 = sbr.rel (%p140) target = $region20
        $region19: #{tpu_custom_call.1} parent=11 // pred_region
          _
        $region20: #{tpu_custom_call.1} parent=11 // pred_fallthru
          _
      $region12: #{tpu_custom_call.1} parent=5 // pred_fallthru
        _
      %p143 = scmp.lt.s32.totalorder %s12, 2
      // Predicated region
      $region21: #{tpu_custom_call.1} parent=5 // pred_check
        %p144 = pneg %p143
      $region22: #{tpu_custom_call.1} parent=5 // pred_check_branch
        %146 = sbr.rel (%p144) target = $region24
      $region23: #{tpu_custom_call.1} parent=5 // pred_region
        // Predicated region
        $region25: #{tpu_custom_call.1} parent=23 // pred_check
          %p147 = pneg %p46
        $region26: #{tpu_custom_call.1} parent=23 // pred_check_branch
          %149 = sbr.rel (%p147) target = $region28
        $region27: #{tpu_custom_call.1} parent=23 // pred_region
          %p150 = scmp.lt.s32.totalorder %s19, 1
          %s151 = scalar_select %p150, %s19, 1
          %p152 = scmp.lt.s32.totalorder %s20, 0
          %s153 = scalar_select %p152, %s20, 0
          %s154 = smul.addr %s151, 16
          %s155 = sadd.s32 %s153, %s154
          %s156 = smul.addr %s155, 4
          %s157 = scalar_lea.vmem %s0, %s156
        $region28: #{tpu_custom_call.1} parent=23 // pred_fallthru
          _
      $region24: #{tpu_custom_call.1} parent=5 // pred_fallthru
        _
      %p158 = scmp.le.s32.totalorder 1, %s12
      %p159 = scmp.lt.s32.totalorder %s12, 3
      %p160 = pnand %p158, %p159
      %p161 = pneg %p160
      // Predicated region
      $region29: #{tpu_custom_call.1} parent=5 // pred_check
        _
      $region30: #{tpu_custom_call.1} parent=5 // pred_check_branch
        %163 = sbr.rel (%p160) target = $region32
      $region31: #{tpu_custom_call.1} parent=5 // pred_region
        %s164 = ssub.s32 %s12, 1
        %p165 = scmp.lt.s32.totalorder %s21, 1
        %s166 = scalar_select %p165, %s21, 1
        %p167 = scmp.lt.s32.totalorder %s22, 0
        %s168 = scalar_select %p167, %s22, 0
        %s169 = smul.addr %s166, 16
        %s170 = sadd.s32 %s168, %s169
        %s171 = smul.addr %s170, 4
        %s172 = scalar_lea.vmem %s0, %s171
        %p173 = pneg %p52
        %p174 = pneg %p49
        %p175 = pneg %p73
        %p176 = pneg %p70
        %p177 = pneg %p94
        %p178 = pneg %p91
        %p179 = pneg %p122
        %p180 = pneg %p119
        %s181 = sand.u32 %s109, 1
        %s182 = scalar_lea.sflag [#allocation3], %s181
        %s183 = sand.u32 %s109, 1
        %s184 = smul.addr %s183, 128
        %s185 = scalar_lea.vmem [#allocation2], %s184
        %p186 = scmp.lt.s32.totalorder %s21, 1
        %s187 = scalar_select %p186, %s21, 1
        %p188 = scmp.lt.s32.totalorder %s22, 0
        %s189 = scalar_select %p188, %s22, 0
        %s190 = smul.addr %s187, 16
        %s191 = sadd.s32 %s189, %s190
        %s192 = smul.addr %s191, 4
        %s193 = scalar_lea.vmem %s0, %s192
        %s194 = smul.u32 8, %s22
        %v196 = vld [vmem:[%s193] sm:$0xf]
        %v197 = vld [vmem:[%s193 + $0x4] sm:$0xf]
        %v198 = vld [vmem:[%s193 + $0x8] sm:$0xf]
        %v199 = vld [vmem:[%s193 + $0xc] sm:$0xf]
        %v200 = vld [vmem:[%s193 + $0x10] sm:$0xf]
        %v201 = vld [vmem:[%s193 + $0x14] sm:$0xf]
        %v202 = vld [vmem:[%s193 + $0x18] sm:$0xf]
        %v203 = vld [vmem:[%s193 + $0x1c] sm:$0xf]
        %v204 = vld [vmem:[%s193 + $0x20] sm:$0xf]
        %v205 = vld [vmem:[%s193 + $0x24] sm:$0xf]
        %v206 = vld [vmem:[%s193 + $0x28] sm:$0xf]
        %v207 = vld [vmem:[%s193 + $0x2c] sm:$0xf]
        %v208 = vld [vmem:[%s193 + $0x30] sm:$0xf]
        %v209 = vld [vmem:[%s193 + $0x34] sm:$0xf]
        %v210 = vld [vmem:[%s193 + $0x38] sm:$0xf]
        %v211 = vld [vmem:[%s193 + $0x3c] sm:$0xf]
        %v212 = vld [vmem:[%s1] sm:$0xff]
        %v213 = vld [vmem:[%s1 + $0x8] sm:$0xff]
        %v214 = vld [vmem:[%s1 + $0x10] sm:$0xff]
        %v215 = vld [vmem:[%s1 + $0x18] sm:$0xff]
        %v216 = vld [vmem:[%s1 + $0x20] sm:$0xff]
        %v217 = vld [vmem:[%s1 + $0x28] sm:$0xff]
        %v218 = vld [vmem:[%s1 + $0x30] sm:$0xff]
        %v219 = vld [vmem:[%s1 + $0x38] sm:$0xff]
        %v220 = vld [vmem:[%s1 + $0x40] sm:$0xff]
        %v221 = vld [vmem:[%s1 + $0x48] sm:$0xff]
        %v222 = vld [vmem:[%s1 + $0x50] sm:$0xff]
        %v223 = vld [vmem:[%s1 + $0x58] sm:$0xff]
        %v224 = vld [vmem:[%s1 + $0x60] sm:$0xff]
        %v225 = vld [vmem:[%s1 + $0x68] sm:$0xff]
        %v226 = vld [vmem:[%s1 + $0x70] sm:$0xff]
        %v227 = vld [vmem:[%s1 + $0x78] sm:$0xff]
        %v228 = vld [vmem:[%s2] sm:$0x3]
        %v230 = vlaneseq
        %v231 = vshrl.u32 %v230, 7
        %v232 = vsub.s32 0, %v231
        %v233 = vrot.slane %v228, %v232
        %v234 = vlaneseq
        %v235 = vshrl.u32 %v234, 7
        %v236 = vsub.s32 1, %v235
        %v237 = vrot.slane %v228, %v236
        %v256 = vunpack.c.l.b16 %v196
        %v257 = vunpack.c.l.b16 %v197
        %v258 = vunpack.c.l.b16 %v198
        %v259 = vunpack.c.l.b16 %v199
        %v260 = vunpack.c.l.b16 %v200
        %v261 = vunpack.c.l.b16 %v201
        %v262 = vunpack.c.l.b16 %v202
        %v263 = vunpack.c.l.b16 %v203
        %v264 = vunpack.c.l.b16 %v204
        %v265 = vunpack.c.l.b16 %v205
        %v266 = vunpack.c.l.b16 %v206
        %v267 = vunpack.c.l.b16 %v207
        %v268 = vunpack.c.l.b16 %v208
        %v269 = vunpack.c.l.b16 %v209
        %v270 = vunpack.c.l.b16 %v210
        %v271 = vunpack.c.l.b16 %v211
        %v272 = vpack.c.b16 %v257, %v256
        %v273 = vpack.c.b16 %v259, %v258
        %v274 = vpack.c.b16 %v261, %v260
        %v275 = vpack.c.b16 %v263, %v262
        %v276 = vpack.c.b16 %v265, %v264
        %v277 = vpack.c.b16 %v267, %v266
        %v278 = vpack.c.b16 %v269, %v268
        %v279 = vpack.c.b16 %v271, %v270
        %288 = vxpose.xlu0.c.b16.start [1/8] %v272, 128
        %289 = vxpose.xlu0.c.b16.cont [2/8] %v273, 128
        %290 = vxpose.xlu0.c.b16.cont [3/8] %v274, 128
        %291 = vxpose.xlu0.c.b16.cont [4/8] %v275, 128
        %292 = vxpose.xlu0.c.b16.cont [5/8] %v276, 128
        %293 = vxpose.xlu0.c.b16.cont [6/8] %v277, 128
        %294 = vxpose.xlu0.c.b16.cont [7/8] %v278, 128
        %295 = vxpose.xlu0.c.b16.end [8/8] %v279, 128
        %v296 = vpop.trf.xlu0
        %v297 = vpop.trf.xlu0
        %v298 = vpop.trf.xlu0
        %v299 = vpop.trf.xlu0
        %v300 = vpop.trf.xlu0
        %v301 = vpop.trf.xlu0
        %v302 = vpop.trf.xlu0
        %v303 = vpop.trf.xlu0
        %v320 = vunpack.c.l.b16 %v212
        %v321 = vunpack.c.h.b16 %v212
        %v322 = vunpack.c.l.b16 %v213
        %v323 = vunpack.c.h.b16 %v213
        %v324 = vunpack.c.l.b16 %v214
        %v325 = vunpack.c.h.b16 %v214
        %v326 = vunpack.c.l.b16 %v215
        %v327 = vunpack.c.h.b16 %v215
        %v328 = vunpack.c.l.b16 %v216
        %v329 = vunpack.c.h.b16 %v216
        %v330 = vunpack.c.l.b16 %v217
        %v331 = vunpack.c.h.b16 %v217
        %v332 = vunpack.c.l.b16 %v218
        %v333 = vunpack.c.h.b16 %v218
        %v334 = vunpack.c.l.b16 %v219
        %v335 = vunpack.c.h.b16 %v219
        %v336 = vunpack.c.l.b16 %v220
        %v337 = vunpack.c.h.b16 %v220
        %v338 = vunpack.c.l.b16 %v221
        %v339 = vunpack.c.h.b16 %v221
        %v340 = vunpack.c.l.b16 %v222
        %v341 = vunpack.c.h.b16 %v222
        %v342 = vunpack.c.l.b16 %v223
        %v343 = vunpack.c.h.b16 %v223
        %v344 = vunpack.c.l.b16 %v224
        %v345 = vunpack.c.h.b16 %v224
        %v346 = vunpack.c.l.b16 %v225
        %v347 = vunpack.c.h.b16 %v225
        %v348 = vunpack.c.l.b16 %v226
        %v349 = vunpack.c.h.b16 %v226
        %v350 = vunpack.c.l.b16 %v227
        %v351 = vunpack.c.h.b16 %v227
        %v352 = vpack.c.b16 %v322, %v320
        %v353 = vpack.c.b16 %v323, %v321
        %v354 = vpack.c.b16 %v326, %v324
        %v355 = vpack.c.b16 %v327, %v325
        %v356 = vpack.c.b16 %v330, %v328
        %v357 = vpack.c.b16 %v331, %v329
        %v358 = vpack.c.b16 %v334, %v332
        %v359 = vpack.c.b16 %v335, %v333
        %v360 = vpack.c.b16 %v338, %v336
        %v361 = vpack.c.b16 %v339, %v337
        %v362 = vpack.c.b16 %v342, %v340
        %v363 = vpack.c.b16 %v343, %v341
        %v364 = vpack.c.b16 %v346, %v344
        %v365 = vpack.c.b16 %v347, %v345
        %v366 = vpack.c.b16 %v350, %v348
        %v367 = vpack.c.b16 %v351, %v349
        %384 = vmatprep.subr.bf16.mxu0 %v353
        %385 = vmatpush1.bf16.msra.mxu0 %v352
        %386 = vmatprep.subr.bf16.mxu0 %v355
        %387 = vmatpush1.bf16.msra.mxu0 %v354
        %388 = vmatprep.subr.bf16.mxu0 %v357
        %389 = vmatpush1.bf16.msra.mxu0 %v356
        %390 = vmatprep.subr.bf16.mxu0 %v359
        %391 = vmatpush1.bf16.msra.mxu0 %v358
        %392 = vmatprep.subr.bf16.mxu0 %v361
        %393 = vmatpush1.bf16.msra.mxu0 %v360
        %394 = vmatprep.subr.bf16.mxu0 %v363
        %395 = vmatpush1.bf16.msra.mxu0 %v362
        %396 = vmatprep.subr.bf16.mxu0 %v365
        %397 = vmatpush1.bf16.msra.mxu0 %v364
        %398 = vmatprep.subr.bf16.mxu0 %v367
        %399 = vmatpush1.bf16.msra.mxu0 %v366
        %400 = vmatprep.subr.bf16.mxu0 0
        %401 = vmatpush1.bf16.msra.mxu0 0
        %402 = vmatprep.subr.bf16.mxu0 0
        %403 = vmatpush1.bf16.msra.mxu0 0
        %404 = vmatprep.subr.bf16.mxu0 0
        %405 = vmatpush1.bf16.msra.mxu0 0
        %406 = vmatprep.subr.bf16.mxu0 0
        %407 = vmatpush1.bf16.msra.mxu0 0
        %408 = vmatprep.subr.bf16.mxu0 0
        %409 = vmatpush1.bf16.msra.mxu0 0
        %410 = vmatprep.subr.bf16.mxu0 0
        %411 = vmatpush1.bf16.msra.mxu0 0
        %412 = vmatprep.subr.bf16.mxu0 0
        %413 = vmatpush1.bf16.msra.mxu0 0
        %414 = vmatprep.subr.bf16.mxu0 0
        %415 = vmatpush1.bf16.msra.mxu0 0
        %416 = vmatprep.mubr.bf16.mxu0 0
        %417 = vmatmul.mubr.bf16.gmra.mrb[0].mxu0 %v296
        %v418 = vpop.f32.mrb[0].mxu0
        %v419 = vadd.f32 %v233, %v418
        %v420 = vpop.f32.mrb[0].mxu0
        %v421 = vadd.f32 %v237, %v420
        %v422 = vpop.f32.mrb[0].mxu0
        %v423 = vadd.f32 %v233, %v422
        %v424 = vpop.f32.mrb[0].mxu0
        %v425 = vadd.f32 %v237, %v424
        %426 = vmatprep.mubr.bf16.mxu0 0
        %427 = vmatmul.mubr.bf16.gmra.mrb[0].mxu0 %v297
        %v428 = vpop.f32.mrb[0].mxu0
        %v429 = vadd.f32 %v233, %v428
        %v430 = vpop.f32.mrb[0].mxu0
        %v431 = vadd.f32 %v237, %v430
        %v432 = vpop.f32.mrb[0].mxu0
        %v433 = vadd.f32 %v233, %v432
        %v434 = vpop.f32.mrb[0].mxu0
        %v435 = vadd.f32 %v237, %v434
        %436 = vmatprep.mubr.bf16.mxu0 0
        %437 = vmatmul.mubr.bf16.gmra.mrb[0].mxu0 %v298
        %v438 = vpop.f32.mrb[0].mxu0
        %v439 = vadd.f32 %v233, %v438
        %v440 = vpop.f32.mrb[0].mxu0
        %v441 = vadd.f32 %v237, %v440
        %v442 = vpop.f32.mrb[0].mxu0
        %v443 = vadd.f32 %v233, %v442
        %v444 = vpop.f32.mrb[0].mxu0
        %v445 = vadd.f32 %v237, %v444
        %446 = vmatprep.mubr.bf16.mxu0 0
        %447 = vmatmul.mubr.bf16.gmra.mrb[0].mxu0 %v299
        %v448 = vpop.f32.mrb[0].mxu0
        %v449 = vadd.f32 %v233, %v448
        %v450 = vpop.f32.mrb[0].mxu0
        %v451 = vadd.f32 %v237, %v450
        %v452 = vpop.f32.mrb[0].mxu0
        %v453 = vadd.f32 %v233, %v452
        %v454 = vpop.f32.mrb[0].mxu0
        %v455 = vadd.f32 %v237, %v454
        %456 = vdwg.mxu0
        %457 = vst [vmem:[%s185] sm:$0xff] %v419
        %458 = vst [vmem:[%s185 + $0x8] sm:$0xff] %v421
        %459 = vst [vmem:[%s185 + $0x10] sm:$0xff] %v423
        %460 = vst [vmem:[%s185 + $0x18] sm:$0xff] %v425
        %461 = vst [vmem:[%s185 + $0x20] sm:$0xff] %v429
        %462 = vst [vmem:[%s185 + $0x28] sm:$0xff] %v431
        %463 = vst [vmem:[%s185 + $0x30] sm:$0xff] %v433
        %464 = vst [vmem:[%s185 + $0x38] sm:$0xff] %v435
        %465 = vst [vmem:[%s185 + $0x40] sm:$0xff] %v439
        %466 = vst [vmem:[%s185 + $0x48] sm:$0xff] %v441
        %467 = vst [vmem:[%s185 + $0x50] sm:$0xff] %v443
        %468 = vst [vmem:[%s185 + $0x58] sm:$0xff] %v445
        %469 = vst [vmem:[%s185 + $0x60] sm:$0xff] %v449
        %470 = vst [vmem:[%s185 + $0x68] sm:$0xff] %v451
        %471 = vst [vmem:[%s185 + $0x70] sm:$0xff] %v453
        %472 = vst [vmem:[%s185 + $0x78] sm:$0xff] %v455
        %s473 = sand.u32 %s109, 1
        %s474 = scalar_lea.sflag [#allocation3], %s473
        %s475 = sand.u32 %s109, 1
        %s476 = smul.addr %s475, 128
        %s477 = scalar_lea.vmem [#allocation2], %s476
        // Predicated region
        $region33: #{tpu_custom_call.1} parent=31 // pred_check
          %p478 = pneg %p119
        $region34: #{tpu_custom_call.1} parent=31 // pred_check_branch
          %480 = sbr.rel (%p478) target = $region36
        $region35: #{tpu_custom_call.1} parent=31 // pred_region
          %s481 = smul.u32 8, %s22
          %s483 = ssub.s32 2048, 2048
          %484 = vsyncadd %s474, %s483
          %s485 = smul.addr %s481, 2
          %s486 = smul.addr %s21, 16
          %s487 = sadd.s32 %s485, %s486
          %s488 = smul.addr %s487, 128
          %s489 = scalar_lea.hbm %s3, %s488
          %s490 = sshll.u32 %s477, 4
          %s491 = int_to_ptr.vmem [resolvable:$true] %s490
          %496 = dma.vmem_to_hbm [thread:$0]  %s491, 2048, %s489, %s474, 256, 256, 16
        $region36: #{tpu_custom_call.1} parent=31 // pred_fallthru
          _
      $region32: #{tpu_custom_call.1} parent=5 // pred_fallthru
        _
      %p497 = scmp.le.s32.totalorder 2, %s12
      // Predicated region
      $region37: #{tpu_custom_call.1} parent=5 // pred_check
        %p498 = pneg %p497
      $region38: #{tpu_custom_call.1} parent=5 // pred_check_branch
        %500 = sbr.rel (%p498) target = $region40
      $region39: #{tpu_custom_call.1} parent=5 // pred_region
        %s501 = ssub.s32 %s12, 2
        // Predicated region
        $region41: #{tpu_custom_call.1} parent=39 // pred_check
          %p502 = pneg %p125
        $region42: #{tpu_custom_call.1} parent=39 // pred_check_branch
          %504 = sbr.rel (%p502) target = $region44
        $region43: #{tpu_custom_call.1} parent=39 // pred_region
          %s505 = sand.u32 %s110, 1
          %s506 = scalar_lea.sflag [#allocation3], %s505
          %s507 = sand.u32 %s110, 1
          %s508 = smul.addr %s507, 128
          %s509 = scalar_lea.vmem [#allocation2], %s508
          %510 = dma.done %s506, 2048
        $region44: #{tpu_custom_call.1} parent=39 // pred_fallthru
          _
      $region40: #{tpu_custom_call.1} parent=5 // pred_fallthru
        _
    $region6: #{tpu_custom_call.1} parent=1 // loop_footer
      %s16 = sadd.s32 1, %s12
    $region7: #{tpu_custom_call.1} parent=1 // loop_footer_branch
      %11 = sbr.rel target = $region3
    $region8: #{tpu_custom_call.1} parent=1 // loop_exit
      _
    %511 = vsyncpa [#allocation3], 1
    %s512 = scalar_lea.sflag [#allocation3], 1
    %513 = vsyncpa %s512, 1

</llo_original>
